<compile_context>
chip_gen: v7x
topology: tpu7x:2x2x1
jax: 0.10.0
libtpu: 0.0.40
codegen_flags: <defaults>
</compile_context>

<pallas_src>
import math

import jax
import jax.numpy as jnp
from jax.experimental import pallas as pl
from jax.experimental.pallas import tpu as pltpu


def _patch_embed_kernel(x_ref, w_ref, pos_ref, o_ref):
    # x_ref:   (TM, D)  bf16 patch rows (B*N folded into M)
    # w_ref:   (D, E)   bf16 linear weight (transposed vs. PyTorch)
    # pos_ref: (TM, E)  f32 (pos_embedding + bias), pre-tiled to the M tile
    # o_ref:   (TM, E)  output tile
    acc = jnp.dot(x_ref[...], w_ref[...], preferred_element_type=jnp.float32)
    o_ref[...] = (acc + pos_ref[...]).astype(o_ref.dtype)


def rearrange_to_patches(x, patch_size):
    """'b c (h p1) (w p2) -> b (h w) (p1 p2 c)' in plain JAX (glue only)."""
    b, c, H, W = x.shape
    p = patch_size
    h, w = H // p, W // p
    x = x.reshape(b, c, h, p, w, p)            # (b, c, h, p1, w, p2)
    x = jnp.transpose(x, (0, 2, 4, 3, 5, 1))   # (b, h, w, p1, p2, c)
    return x.reshape(b, h * w, p * p * c)      # (b, N, D)


def _tpu_generation():
    """Coarse chip-generation tag from the local device; unknown -> conservative."""
    try:
        kind = jax.devices()[0].device_kind.lower()
    except Exception:  # pragma: no cover - no device / interpret mode
        return "unknown"
    for tag in ("v7", "v6", "v5"):
        if tag in kind:
            return tag
    return "unknown"


def _choose_tm(M, N, target, min_steps):
    """Pick the M-tile size.

    Tiles are whole numbers of pos-embedding periods (TM % N == 0) so the
    (TM, E) pos block is grid-invariant.  Prefer 16-row alignment (bf16
    sublane packing), minimal padding waste, at least `min_steps` grid steps
    (pipelining / megacore), MXU-friendly 256-multiples, then the largest
    tile that fits under `target`.  M is padded up to a TM multiple by the
    caller, so TM never needs to divide M exactly.
    """
    target = max(target, N)
    cands = [N * k for k in range(1, target // N + 1)]
    aligned = [t for t in cands if t % 16 == 0]
    if aligned:
        cands = aligned
    else:
        eight = [t for t in cands if t % 8 == 0]
        if eight:
            cands = eight

    def steps(tm):
        return -(-M // tm)

    def waste(tm):
        return steps(tm) * tm - M

    return max(cands, key=lambda tm: (min(steps(tm), min_steps),
                                      -waste(tm),
                                      tm % 256 == 0,
                                      tm))


def patch_embedding_forward(x, weight, bias, pos_embedding, patch_size,
                            tm_target=None, out_dtype=None):
    """x: (B, C, H, W) NCHW.  Returns (B, N, E)."""
    patches = rearrange_to_patches(x, patch_size)             # (B, N, D)
    B, N, D = patches.shape
    E = weight.shape[1]
    M = B * N
    out_dtype = jnp.dtype(x.dtype) if out_dtype is None else jnp.dtype(out_dtype)

    # Generation-aware tile target / step count / VMEM cap.
    gen = _tpu_generation()
    if gen in ("v5", "v6"):
        target = 2048 if tm_target is None else tm_target   # 128 MiB VMEM, 1 TC
        min_steps = 1
        vmem_cap = 100 << 20
    else:                                                    # v7x or unknown
        target = 512 if tm_target is None else tm_target     # 64 MiB VMEM, 2 TCs
        min_steps = 4
        vmem_cap = 32 << 20

    TM = _choose_tm(M, N, target, min_steps)
    reps = TM // N
    grid_m = -(-M // TM)
    M_pad = grid_m * TM

    # bf16 matmul operands (f32 accumulation inside the kernel).  The
    # reshape/transpose/cast producer may be fused into the pallas_call input
    # (allow_input_fusion below), avoiding a materialized HBM slab.
    patches2d = patches.reshape(M, D).astype(jnp.bfloat16)   # (M, D)
    if M_pad != M:
        patches2d = jnp.pad(patches2d, ((0, M_pad - M), (0, 0)))
    w_bf16 = weight.astype(jnp.bfloat16)                     # (D, E)

    pos2d = pos_embedding.reshape(pos_embedding.shape[-2], E)  # (N, E)
    assert pos2d.shape[0] == N, "pos_embedding length must equal num patches"
    # Pre-add the Linear bias into the positional embedding (f32 epilogue).
    pos_bias = (pos2d + bias.reshape(1, E)).astype(jnp.float32)
    pos_tile = jnp.tile(pos_bias, (reps, 1)) if reps > 1 else pos_bias  # (TM, E)

    out_itemsize = out_dtype.itemsize
    # Double-buffered footprint of all pipeline buffers + headroom, clamped to
    # the generation-specific cap.
    footprint = (2 * TM * D * 2          # streaming bf16 patch tiles
                 + 2 * D * E * 2         # resident bf16 weight
                 + 2 * TM * E * 4        # resident f32 pos+bias tile
                 + 2 * TM * E * out_itemsize)
    vmem_limit = int(min(vmem_cap, max(32 << 20, 2 * footprint + (4 << 20))))

    cost = pl.CostEstimate(
        flops=2 * M_pad * D * E,
        transcendentals=0,
        bytes_accessed=int(M_pad * D * 2 + D * E * 2 + TM * E * 4
                           + M_pad * E * out_itemsize),
    )

    out2d = pl.pallas_call(
        _patch_embed_kernel,
        out_shape=jax.ShapeDtypeStruct((M_pad, E), out_dtype),
        grid_spec=pltpu.PrefetchScalarGridSpec(
            num_scalar_prefetch=0,
            grid=(grid_m,),
            in_specs=[
                pl.BlockSpec((TM, D), lambda i: (i, 0)),   # patch rows (streams)
                pl.BlockSpec((D, E), lambda i: (0, 0)),    # weight (resident)
                pl.BlockSpec((TM, E), lambda i: (0, 0)),   # pos+bias (resident)
            ],
            out_specs=pl.BlockSpec((TM, E), lambda i: (i, 0)),
        ),
        compiler_params=pltpu.CompilerParams(
            dimension_semantics=("parallel",),
            vmem_limit_bytes=vmem_limit,
            # Let XLA fuse the rearrange/reshape/bf16-cast producer into the
            # streaming patch input; weight / pos stay materialized.
            allow_input_fusion=[True, False, False],
        ),
        cost_estimate=cost,
    )(patches2d, w_bf16, pos_tile)

    if M_pad != M:
        out2d = out2d[:M]
    return out2d.reshape(B, N, E)


def reference_forward_bf16(x, weight, bias, pos_embedding, patch_size):
    """Reference with the same bf16 matmul-operand cast as the kernel."""
    patches = rearrange_to_patches(x, patch_size)
    acc = jnp.dot(patches.astype(jnp.bfloat16), weight.astype(jnp.bfloat16),
                  preferred_element_type=jnp.float32)
    return acc + bias + pos_embedding


def reference_forward_f32(x, weight, bias, pos_embedding, patch_size):
    patches = rearrange_to_patches(x, patch_size)
    return patches @ weight + bias + pos_embedding


if __name__ == "__main__":
    # Shapes must satisfy num_patches == img_size // 2 (implicit requirement of
    # the PyTorch module for the pos_embedding broadcast):
    #   (img_size / patch_size)^2 == img_size / 2  ->  img_size = patch_size^2 / 2
    batch = 2
    in_channels = 4
    patch_size = 8
    img_size = 32            # = patch_size^2 / 2
    emb_size = 128
    num_patches = (img_size // patch_size) ** 2          # 16 == img_size // 2
    patch_dim = patch_size * patch_size * in_channels    # 256

    key = jax.random.PRNGKey(0)
    k_x, k_w, k_b, k_pos = jax.random.split(key, 4)

    x = jax.random.normal(k_x, (batch, in_channels, img_size, img_size),
                          dtype=jnp.float32)

    # nn.Linear default init: uniform(-1/sqrt(fan_in), 1/sqrt(fan_in))
    bound = 1.0 / math.sqrt(patch_dim)
    weight = jax.random.uniform(k_w, (patch_dim, emb_size), jnp.float32,
                                minval=-bound, maxval=bound)
    bias = jax.random.uniform(k_b, (emb_size,), jnp.float32,
                              minval=-bound, maxval=bound)
    # nn.Parameter(torch.randn(1, img_size // 2, emb_size))
    pos_embedding = jax.random.normal(k_pos, (1, img_size // 2, emb_size),
                                      dtype=jnp.float32)

    fwd = jax.jit(patch_embedding_forward,
                  static_argnames=("patch_size", "tm_target", "out_dtype"))
    out = fwd(x, weight, bias, pos_embedding, patch_size=patch_size)
    out = jax.block_until_ready(out)

    assert out.shape == (batch, num_patches, emb_size)

    ref_bf16 = reference_forward_bf16(x, weight, bias, pos_embedding, patch_size)
    ref_f32 = reference_forward_f32(x, weight, bias, pos_embedding, patch_size)
    # Tight check against a reference that uses the same bf16 operand cast.
    assert jnp.allclose(out, ref_bf16, atol=1e-3, rtol=1e-3)
    # Looser sanity check against the pure-f32 PyTorch-equivalent math.
    assert jnp.allclose(out, ref_f32, atol=5e-2, rtol=5e-2)

    print("KERNEL_OK")
</pallas_src>

<mosaic_0001>
module attributes {stable_mosaic.version = 11 : i64} {
  func.func @_patch_embed_kernel(%arg0: i32, %arg1: memref<16x256xbf16, #tpu.memory_space<vmem>>, %arg2: memref<256x128xbf16, #tpu.memory_space<vmem>>, %arg3: memref<16x128xf32, #tpu.memory_space<vmem>>, %arg4: memref<16x128xf32, #tpu.memory_space<vmem>>) attributes {dimension_semantics = [#tpu.dimension_semantics<parallel>], iteration_bounds = array<i64: 2>, scalar_prefetch = 0 : i64, scratch_operands = 0 : i64, tpu.core_type = #tpu.core_type<tc>, window_params = [{transform_indices = @transform_0, window_bounds = array<i64: 16, 256>}, {pipeline_mode = #tpu.pipeline_mode<synchronous>, transform_indices = @transform_1, window_bounds = array<i64: 256, 128>}, {pipeline_mode = #tpu.pipeline_mode<synchronous>, transform_indices = @transform_2, window_bounds = array<i64: 16, 128>}, {transform_indices = @transform_3, window_bounds = array<i64: 16, 128>}]} {
    %c0 = arith.constant 0 : index
    %c0_0 = arith.constant 0 : index
    %0 = vector.load %arg1[%c0, %c0_0] : memref<16x256xbf16, #tpu.memory_space<vmem>>, vector<16x256xbf16>
    %c0_1 = arith.constant 0 : index
    %c0_2 = arith.constant 0 : index
    %1 = vector.load %arg2[%c0_1, %c0_2] : memref<256x128xbf16, #tpu.memory_space<vmem>>, vector<256x128xbf16>
    %cst = arith.constant dense<0.000000e+00> : vector<16x128xf32>
    %2 = tpu.matmul %0, %1, %cst {dimension_numbers = #tpu.dot_dimension_numbers<[1], [0], [0], [1], [0, 0, 1, 1], [], []>} : vector<16x256xbf16>, vector<256x128xbf16>, vector<16x128xf32> -> vector<16x128xf32>
    %c0_3 = arith.constant 0 : index
    %c0_4 = arith.constant 0 : index
    %3 = vector.load %arg3[%c0_3, %c0_4] : memref<16x128xf32, #tpu.memory_space<vmem>>, vector<16x128xf32>
    %4 = arith.addf %2, %3 : vector<16x128xf32>
    %c0_5 = arith.constant 0 : index
    %c0_6 = arith.constant 0 : index
    %5 = vector.load %arg4[%c0_5, %c0_6] : memref<16x128xf32, #tpu.memory_space<vmem>>, vector<16x128xf32>
    tpu.vector_store %arg4[%c0_5, %c0_6], %4 {strides = array<i32>} : memref<16x128xf32, #tpu.memory_space<vmem>>, vector<16x128xf32>,
    return
  }
  func.func @transform_0(%arg0: i32) -> (i32, i32) {
    %c0_i32 = arith.constant 0 : i32
    %c0_i32_0 = arith.constant 0 : i32
    return %arg0, %c0_i32 : i32, i32
  }
  func.func @transform_1(%arg0: i32) -> (i32, i32) {
    %c0_i32 = arith.constant 0 : i32
    %c0_i32_0 = arith.constant 0 : i32
    %c0_i32_1 = arith.constant 0 : i32
    return %c0_i32, %c0_i32_0 : i32, i32
  }
  func.func @transform_2(%arg0: i32) -> (i32, i32) {
    %c0_i32 = arith.constant 0 : i32
    %c0_i32_0 = arith.constant 0 : i32
    %c0_i32_1 = arith.constant 0 : i32
    return %c0_i32, %c0_i32_0 : i32, i32
  }
  func.func @transform_3(%arg0: i32) -> (i32, i32) {
    %c0_i32 = arith.constant 0 : i32
    %c0_i32_0 = arith.constant 0 : i32
    return %arg0, %c0_i32 : i32, i32
  }
}

</mosaic_0001>

<llo_original>
// kernel: patch_embedding_forward.1
$region0: #{patch_embedding_forward.1}
  #allocation0 [shape = 'u32[]', space=smem, size = 0x4, offset = 0x4, fixed_abs, tag = 'smem constant byte address 0x4 - core index']
  #allocation1 [shape = 'u32[144,128]{1,0:T(1,128)}', space=vmem, size = 0x12000, scoped, tag = 'internal scratch']
  %s0 = inlined_call_operand.vmem [shape: bf16[32,256], index: 0, kind: input, shape index: {}]
  %s1 = inlined_call_operand.vmem [shape: bf16[256,128], index: 1, kind: input, shape index: {}]
  %s2 = inlined_call_operand.vmem [shape: f32[16,128], index: 2, kind: input, shape index: {}]
  %s3 = inlined_call_operand.hbm [shape: f32[32,128], index: 3, kind: output, shape index: {}]
  %s4 = sld [smem:[#allocation0]]
  $region45: #{patch_embedding_forward.1} parent=0
    _
  %s6 = ssub.s32 1, %s4
  %s7 = scalar_select 0, %s6, %s4
  $region1: #{patch_embedding_forward.1} parent=0
    #allocation2 [shape = 'u8[16384]{0}', space=vmem, size = 0x4000, scoped, tag = 'output window, operand 0']
    #allocation3 [shape = 's32[2]{0}', space=sflag, size = 0x8, scoped, tag = 'scoped memory for patch_embedding_forward.1']
    %8 = vsyncpa [#allocation3], 0
    %s9 = scalar_lea.sflag [#allocation3], 1
    %10 = vsyncpa %s9, 0
    loop: start=0, step=1, limit=4
    $region2: #{patch_embedding_forward.1} parent=1 // loop_pre_header
      _
    $region3: #{patch_embedding_forward.1} parent=1 // loop_header
      %s12 = sphi 0, %s16
      %p13 = scmp.ge.s32.totalorder %s12, 4
      %s22 = sphi 0, %s24
      %s25 = sphi 0, %s22
      %s26 = sphi 0, %s25
      %s42 = sphi 0, %s26
      %s46 = sphi 0, %s46
      %s48 = sphi 0, %s46
      %s49 = sphi 0, %s48
      %s63 = sphi 0, %s49
      %s67 = sphi 0, %s67
      %s69 = sphi 0, %s67
      %s70 = sphi 0, %s69
      %s84 = sphi 0, %s70
      %s90 = sphi 0, %s92
      %s93 = sphi 0, %s90
      %s94 = sphi 0, %s93
      %s110 = sphi 0, %s94
    $region4: #{patch_embedding_forward.1} parent=1 // loop_header_branch
      %15 = sbr.rel (%p13) target = $region8
    $region5: #{patch_embedding_forward.1} parent=1 // loop_body
      %s17 = ssub.s32 %s12, 1
      %s18 = ssub.s32 %s12, 2
      %s19 = sadd.s32 %s12, 1
      %s20 = ssub.s32 %s12, %s19
      %p21 = scmp.eq.s32.totalorder %s20, 0
      %s23 = sadd.s32 %s22, 1
      %s24 = scalar_select %p21, %s22, %s23
      %p27 = pneg %p21
      %p28 = scmp.eq.s32.totalorder %s12, 1
      %p29 = por %p27, %p28
      %p30 = scmp.ne.s32.totalorder %s22, %s25
      %p31 = scmp.eq.s32.totalorder %s12, 0
      %p32 = por %p30, %p31
      %p33 = scmp.ne.s32.totalorder %s22, %s25
      %p34 = scmp.eq.s32.totalorder %s17, 1
      %p35 = por %p33, %p34
      %p36 = scmp.ne.s32.totalorder %s25, %s26
      %p37 = scmp.eq.s32.totalorder %s17, 0
      %p38 = por %p36, %p37
      %p39 = scmp.ne.s32.totalorder %s25, %s26
      %p40 = scmp.eq.s32.totalorder %s18, 1
      %p41 = por %p39, %p40
      %p43 = scmp.ne.s32.totalorder %s26, %s42
      %p44 = scmp.eq.s32.totalorder %s18, 0
      %p45 = por %p43, %p44
      %s47 = sadd.s32 %s46, 1
      %p50 = scmp.eq.s32.totalorder %s12, 1
      %p51 = scmp.ne.s32.totalorder %s46, %s48
      %p52 = scmp.eq.s32.totalorder %s12, 0
      %p53 = por %p51, %p52
      %p54 = scmp.ne.s32.totalorder %s46, %s48
      %p55 = scmp.eq.s32.totalorder %s17, 1
      %p56 = por %p54, %p55
      %p57 = scmp.ne.s32.totalorder %s48, %s49
      %p58 = scmp.eq.s32.totalorder %s17, 0
      %p59 = por %p57, %p58
      %p60 = scmp.ne.s32.totalorder %s48, %s49
      %p61 = scmp.eq.s32.totalorder %s18, 1
      %p62 = por %p60, %p61
      %p64 = scmp.ne.s32.totalorder %s49, %s63
      %p65 = scmp.eq.s32.totalorder %s18, 0
      %p66 = por %p64, %p65
      %s68 = sadd.s32 %s67, 1
      %p71 = scmp.eq.s32.totalorder %s12, 1
      %p72 = scmp.ne.s32.totalorder %s67, %s69
      %p73 = scmp.eq.s32.totalorder %s12, 0
      %p74 = por %p72, %p73
      %p75 = scmp.ne.s32.totalorder %s67, %s69
      %p76 = scmp.eq.s32.totalorder %s17, 1
      %p77 = por %p75, %p76
      %p78 = scmp.ne.s32.totalorder %s69, %s70
      %p79 = scmp.eq.s32.totalorder %s17, 0
      %p80 = por %p78, %p79
      %p81 = scmp.ne.s32.totalorder %s69, %s70
      %p82 = scmp.eq.s32.totalorder %s18, 1
      %p83 = por %p81, %p82
      %p85 = scmp.ne.s32.totalorder %s70, %s84
      %p86 = scmp.eq.s32.totalorder %s18, 0
      %p87 = por %p85, %p86
      %s88 = ssub.s32 %s12, %s19
      %p89 = scmp.eq.s32.totalorder %s88, 0
      %s91 = sadd.s32 %s90, 1
      %s92 = scalar_select %p89, %s90, %s91
      %p95 = pneg %p89
      %p96 = scmp.eq.s32.totalorder %s12, 1
      %p97 = por %p95, %p96
      %p98 = scmp.ne.s32.totalorder %s90, %s93
      %p99 = scmp.eq.s32.totalorder %s12, 0
      %p100 = por %p98, %p99
      %p101 = scmp.ne.s32.totalorder %s90, %s93
      %p102 = scmp.eq.s32.totalorder %s17, 1
      %p103 = por %p101, %p102
      %p104 = scmp.ne.s32.totalorder %s93, %s94
      %p105 = scmp.eq.s32.totalorder %s17, 0
      %p106 = por %p104, %p105
      %p107 = scmp.ne.s32.totalorder %s93, %s94
      %p108 = scmp.eq.s32.totalorder %s18, 1
      %p109 = por %p107, %p108
      %p111 = scmp.ne.s32.totalorder %s94, %s110
      %p112 = scmp.eq.s32.totalorder %s18, 0
      %p113 = por %p111, %p112
      %p114 = scmp.le.s32.totalorder 1, %s12
      %p115 = scmp.lt.s32.totalorder %s12, 3
      %p116 = pnand %p114, %p115
      %p117 = pneg %p116
      // Predicated region
      $region9: #{patch_embedding_forward.1} parent=5 // pred_check
        _
      $region10: #{patch_embedding_forward.1} parent=5 // pred_check_branch
        %119 = sbr.rel (%p116) target = $region12
      $region11: #{patch_embedding_forward.1} parent=5 // pred_region
        %s120 = ssub.s32 %s12, 1
        // Predicated region
        $region13: #{patch_embedding_forward.1} parent=11 // pred_check
          %p121 = pneg %p59
        $region14: #{patch_embedding_forward.1} parent=11 // pred_check_branch
          %123 = sbr.rel (%p121) target = $region16
        $region15: #{patch_embedding_forward.1} parent=11 // pred_region
          _
        $region16: #{patch_embedding_forward.1} parent=11 // pred_fallthru
          _
        // Predicated region
        $region17: #{patch_embedding_forward.1} parent=11 // pred_check
          %p124 = pneg %p80
        $region18: #{patch_embedding_forward.1} parent=11 // pred_check_branch
          %126 = sbr.rel (%p124) target = $region20
        $region19: #{patch_embedding_forward.1} parent=11 // pred_region
          _
        $region20: #{patch_embedding_forward.1} parent=11 // pred_fallthru
          _
      $region12: #{patch_embedding_forward.1} parent=5 // pred_fallthru
        _
      %p127 = scmp.lt.s32.totalorder %s12, 2
      // Predicated region
      $region21: #{patch_embedding_forward.1} parent=5 // pred_check
        %p128 = pneg %p127
      $region22: #{patch_embedding_forward.1} parent=5 // pred_check_branch
        %130 = sbr.rel (%p128) target = $region24
      $region23: #{patch_embedding_forward.1} parent=5 // pred_region
        // Predicated region
        $region25: #{patch_embedding_forward.1} parent=23 // pred_check
          %p131 = pneg %p32
        $region26: #{patch_embedding_forward.1} parent=23 // pred_check_branch
          %133 = sbr.rel (%p131) target = $region28
        $region27: #{patch_embedding_forward.1} parent=23 // pred_region
          %s134 = smul.u32 2, %s12
          %p135 = scmp.lt.s32.totalorder %s134, 3
          %s136 = scalar_select %p135, %s134, 3
          %s137 = smul.addr %s136, 2
          %s138 = smul.addr %s137, 4
          %s139 = scalar_lea.vmem %s0, %s138
          %s140 = smul.u32 2, %s12
        $region28: #{patch_embedding_forward.1} parent=23 // pred_fallthru
          _
      $region24: #{patch_embedding_forward.1} parent=5 // pred_fallthru
        _
      %p141 = scmp.le.s32.totalorder 1, %s12
      %p142 = scmp.lt.s32.totalorder %s12, 3
      %p143 = pnand %p141, %p142
      %p144 = pneg %p143
      // Predicated region
      $region29: #{patch_embedding_forward.1} parent=5 // pred_check
        _
      $region30: #{patch_embedding_forward.1} parent=5 // pred_check_branch
        %146 = sbr.rel (%p143) target = $region32
      $region31: #{patch_embedding_forward.1} parent=5 // pred_region
        %s147 = ssub.s32 %s12, 1
        %s148 = smul.u32 2, %s17
        %p149 = scmp.lt.s32.totalorder %s148, 3
        %s150 = scalar_select %p149, %s148, 3
        %s151 = smul.addr %s150, 2
        %s152 = smul.addr %s151, 4
        %s153 = scalar_lea.vmem %s0, %s152
        %p154 = pneg %p38
        %p155 = pneg %p35
        %p156 = pneg %p59
        %p157 = pneg %p56
        %p158 = pneg %p80
        %p159 = pneg %p77
        %p160 = pneg %p106
        %p161 = pneg %p103
        %s162 = sand.u32 %s93, 1
        %s163 = scalar_lea.sflag [#allocation3], %s162
        %s164 = sand.u32 %s93, 1
        %s165 = smul.addr %s164, 16
        %s166 = scalar_lea.vmem [#allocation2], %s165
        %s167 = smul.u32 2, %s17
        %p168 = scmp.lt.s32.totalorder %s167, 3
        %s169 = scalar_select %p168, %s167, 3
        %s170 = smul.addr %s169, 2
        %s171 = smul.addr %s170, 4
        %s172 = scalar_lea.vmem %s0, %s171
        %s173 = smul.u32 2, %s17
        %s174 = smul.u32 2, %s17
        %v176 = vld [vmem:[%s172] sm:$0xff]
        %v177 = vld [vmem:[%s172 + $0x8] sm:$0xff]
        %v178 = vld [vmem:[%s1] sm:$0xf]
        %v179 = vld [vmem:[%s1 + $0x4] sm:$0xf]
        %v180 = vld [vmem:[%s1 + $0x8] sm:$0xf]
        %v181 = vld [vmem:[%s1 + $0xc] sm:$0xf]
        %v182 = vld [vmem:[%s1 + $0x10] sm:$0xf]
        %v183 = vld [vmem:[%s1 + $0x14] sm:$0xf]
        %v184 = vld [vmem:[%s1 + $0x18] sm:$0xf]
        %v185 = vld [vmem:[%s1 + $0x1c] sm:$0xf]
        %v186 = vld [vmem:[%s1 + $0x20] sm:$0xf]
        %v187 = vld [vmem:[%s1 + $0x24] sm:$0xf]
        %v188 = vld [vmem:[%s1 + $0x28] sm:$0xf]
        %v189 = vld [vmem:[%s1 + $0x2c] sm:$0xf]
        %v190 = vld [vmem:[%s1 + $0x30] sm:$0xf]
        %v191 = vld [vmem:[%s1 + $0x34] sm:$0xf]
        %v192 = vld [vmem:[%s1 + $0x38] sm:$0xf]
        %v193 = vld [vmem:[%s1 + $0x3c] sm:$0xf]
        %v194 = vld [vmem:[%s1 + $0x40] sm:$0xf]
        %v195 = vld [vmem:[%s1 + $0x44] sm:$0xf]
        %v196 = vld [vmem:[%s1 + $0x48] sm:$0xf]
        %v197 = vld [vmem:[%s1 + $0x4c] sm:$0xf]
        %v198 = vld [vmem:[%s1 + $0x50] sm:$0xf]
        %v199 = vld [vmem:[%s1 + $0x54] sm:$0xf]
        %v200 = vld [vmem:[%s1 + $0x58] sm:$0xf]
        %v201 = vld [vmem:[%s1 + $0x5c] sm:$0xf]
        %v202 = vld [vmem:[%s1 + $0x60] sm:$0xf]
        %v203 = vld [vmem:[%s1 + $0x64] sm:$0xf]
        %v204 = vld [vmem:[%s1 + $0x68] sm:$0xf]
        %v205 = vld [vmem:[%s1 + $0x6c] sm:$0xf]
        %v206 = vld [vmem:[%s1 + $0x70] sm:$0xf]
        %v207 = vld [vmem:[%s1 + $0x74] sm:$0xf]
        %v208 = vld [vmem:[%s1 + $0x78] sm:$0xf]
        %v209 = vld [vmem:[%s1 + $0x7c] sm:$0xf]
        %v210 = vld [vmem:[%s2] sm:$0xff]
        %v211 = vld [vmem:[%s2 + $0x8] sm:$0xff]
        %v214 = vunpack.c.l.b16 %v176
        %v215 = vunpack.c.h.b16 %v176
        %v216 = vunpack.c.l.b16 %v177
        %v217 = vunpack.c.h.b16 %v177
        %v218 = vpack.c.b16 %v216, %v214
        %v219 = vpack.c.b16 %v217, %v215
        %v254 = vunpack.c.l.b16 %v178
        %v255 = vunpack.c.l.b16 %v179
        %v256 = vunpack.c.l.b16 %v180
        %v257 = vunpack.c.l.b16 %v181
        %v258 = vunpack.c.l.b16 %v182
        %v259 = vunpack.c.l.b16 %v183
        %v260 = vunpack.c.l.b16 %v184
        %v261 = vunpack.c.l.b16 %v185
        %v262 = vunpack.c.l.b16 %v186
        %v263 = vunpack.c.l.b16 %v187
        %v264 = vunpack.c.l.b16 %v188
        %v265 = vunpack.c.l.b16 %v189
        %v266 = vunpack.c.l.b16 %v190
        %v267 = vunpack.c.l.b16 %v191
        %v268 = vunpack.c.l.b16 %v192
        %v269 = vunpack.c.l.b16 %v193
        %v270 = vunpack.c.l.b16 %v194
        %v271 = vunpack.c.l.b16 %v195
        %v272 = vunpack.c.l.b16 %v196
        %v273 = vunpack.c.l.b16 %v197
        %v274 = vunpack.c.l.b16 %v198
        %v275 = vunpack.c.l.b16 %v199
        %v276 = vunpack.c.l.b16 %v200
        %v277 = vunpack.c.l.b16 %v201
        %v278 = vunpack.c.l.b16 %v202
        %v279 = vunpack.c.l.b16 %v203
        %v280 = vunpack.c.l.b16 %v204
        %v281 = vunpack.c.l.b16 %v205
        %v282 = vunpack.c.l.b16 %v206
        %v283 = vunpack.c.l.b16 %v207
        %v284 = vunpack.c.l.b16 %v208
        %v285 = vunpack.c.l.b16 %v209
        %v286 = vpack.c.b16 %v255, %v254
        %v287 = vpack.c.b16 %v257, %v256
        %v288 = vpack.c.b16 %v259, %v258
        %v289 = vpack.c.b16 %v261, %v260
        %v290 = vpack.c.b16 %v263, %v262
        %v291 = vpack.c.b16 %v265, %v264
        %v292 = vpack.c.b16 %v267, %v266
        %v293 = vpack.c.b16 %v269, %v268
        %v294 = vpack.c.b16 %v271, %v270
        %v295 = vpack.c.b16 %v273, %v272
        %v296 = vpack.c.b16 %v275, %v274
        %v297 = vpack.c.b16 %v277, %v276
        %v298 = vpack.c.b16 %v279, %v278
        %v299 = vpack.c.b16 %v281, %v280
        %v300 = vpack.c.b16 %v283, %v282
        %v301 = vpack.c.b16 %v285, %v284
        %318 = vmatprep.subr.bf16.mxu0 0
        %319 = vmatpush1.bf16.msra.mxu0 %v286
        %320 = vmatprep.subr.bf16.mxu0 0
        %321 = vmatpush1.bf16.msra.mxu0 %v287
        %322 = vmatprep.subr.bf16.mxu0 0
        %323 = vmatpush1.bf16.msra.mxu0 %v288
        %324 = vmatprep.subr.bf16.mxu0 0
        %325 = vmatpush1.bf16.msra.mxu0 %v289
        %326 = vmatprep.subr.bf16.mxu0 0
        %327 = vmatpush1.bf16.msra.mxu0 %v290
        %328 = vmatprep.subr.bf16.mxu0 0
        %329 = vmatpush1.bf16.msra.mxu0 %v291
        %330 = vmatprep.subr.bf16.mxu0 0
        %331 = vmatpush1.bf16.msra.mxu0 %v292
        %332 = vmatprep.subr.bf16.mxu0 0
        %333 = vmatpush1.bf16.msra.mxu0 %v293
        %334 = vmatprep.subr.bf16.mxu0 0
        %335 = vmatpush1.bf16.msra.mxu0 %v294
        %336 = vmatprep.subr.bf16.mxu0 0
        %337 = vmatpush1.bf16.msra.mxu0 %v295
        %338 = vmatprep.subr.bf16.mxu0 0
        %339 = vmatpush1.bf16.msra.mxu0 %v296
        %340 = vmatprep.subr.bf16.mxu0 0
        %341 = vmatpush1.bf16.msra.mxu0 %v297
        %342 = vmatprep.subr.bf16.mxu0 0
        %343 = vmatpush1.bf16.msra.mxu0 %v298
        %344 = vmatprep.subr.bf16.mxu0 0
        %345 = vmatpush1.bf16.msra.mxu0 %v299
        %346 = vmatprep.subr.bf16.mxu0 0
        %347 = vmatpush1.bf16.msra.mxu0 %v300
        %348 = vmatprep.subr.bf16.mxu0 0
        %349 = vmatpush1.bf16.msra.mxu0 %v301
        %350 = vmatprep.mubr.bf16.mxu0 %v219
        %351 = vmatmul.mubr.bf16.gmra.mrb[0].mxu0 %v218
        %v352 = vpop.f32.mrb[0].mxu0
        %v353 = vadd.f32 %v210, %v352
        %v354 = vpop.f32.mrb[0].mxu0
        %v355 = vpop.f32.mrb[0].mxu0
        %v356 = vadd.f32 %v211, %v355
        %v357 = vpop.f32.mrb[0].mxu0
        %358 = vdwg.mxu0
        %359 = vst [vmem:[%s166] sm:$0xff] %v353
        %360 = vst [vmem:[%s166 + $0x8] sm:$0xff] %v356
        %s361 = sand.u32 %s93, 1
        %s362 = scalar_lea.sflag [#allocation3], %s361
        %s363 = sand.u32 %s93, 1
        %s364 = smul.addr %s363, 16
        %s365 = scalar_lea.vmem [#allocation2], %s364
        // Predicated region
        $region33: #{patch_embedding_forward.1} parent=31 // pred_check
          %p366 = pneg %p103
        $region34: #{patch_embedding_forward.1} parent=31 // pred_check_branch
          %368 = sbr.rel (%p366) target = $region36
        $region35: #{patch_embedding_forward.1} parent=31 // pred_region
          %s369 = smul.u32 2, %s17
          %s371 = ssub.s32 256, 256
          %372 = vsyncadd %s362, %s371
          %s373 = smul.addr %s369, 128
          %s374 = scalar_lea.hbm %s3, %s373
          %s375 = sshll.u32 %s365, 4
          %s376 = int_to_ptr.vmem [resolvable:$true] %s375
          %381 = dma.vmem_to_hbm [thread:$0]  %s376, 256, %s374, %s362, 128, 128, 8
        $region36: #{patch_embedding_forward.1} parent=31 // pred_fallthru
          _
      $region32: #{patch_embedding_forward.1} parent=5 // pred_fallthru
        _
      %p382 = scmp.le.s32.totalorder 2, %s12
      // Predicated region
      $region37: #{patch_embedding_forward.1} parent=5 // pred_check
        %p383 = pneg %p382
      $region38: #{patch_embedding_forward.1} parent=5 // pred_check_branch
        %385 = sbr.rel (%p383) target = $region40
      $region39: #{patch_embedding_forward.1} parent=5 // pred_region
        %s386 = ssub.s32 %s12, 2
        // Predicated region
        $region41: #{patch_embedding_forward.1} parent=39 // pred_check
          %p387 = pneg %p109
        $region42: #{patch_embedding_forward.1} parent=39 // pred_check_branch
          %389 = sbr.rel (%p387) target = $region44
        $region43: #{patch_embedding_forward.1} parent=39 // pred_region
          %s390 = sand.u32 %s94, 1
          %s391 = scalar_lea.sflag [#allocation3], %s390
          %s392 = sand.u32 %s94, 1
          %s393 = smul.addr %s392, 16
          %s394 = scalar_lea.vmem [#allocation2], %s393
          %395 = dma.done %s391, 256
        $region44: #{patch_embedding_forward.1} parent=39 // pred_fallthru
          _
      $region40: #{patch_embedding_forward.1} parent=5 // pred_fallthru
        _
    $region6: #{patch_embedding_forward.1} parent=1 // loop_footer
      %s16 = sadd.s32 1, %s12
    $region7: #{patch_embedding_forward.1} parent=1 // loop_footer_branch
      %11 = sbr.rel target = $region3
    $region8: #{patch_embedding_forward.1} parent=1 // loop_exit
      _
    %396 = vsyncpa [#allocation3], 1
    %s397 = scalar_lea.sflag [#allocation3], 1
    %398 = vsyncpa %s397, 1

</llo_original>
